<compile_context>
chip_gen: v7x
topology: tpu7x:2x2x1
jax: 0.10.0
libtpu: 0.0.40
codegen_flags: <defaults>
</compile_context>

<pallas_src>
import functools
import math

import jax
import jax.numpy as jnp
from jax import lax
from jax.experimental import pallas as pl
from jax.experimental.pallas import tpu as pltpu


_INV_SQRT2 = 1.0 / math.sqrt(2.0)
_VMEM_RESERVE = 4 * 1024 * 1024       # headroom for Mosaic internal scratch
_F32_TMP_FACTOR = 4                   # f32 matmul result + erf temporaries / out elem

# Compat shim (modern name is pltpu.MemorySpace).
_MS = getattr(pltpu, "MemorySpace", None) or getattr(pltpu, "TPUMemorySpace")


def _round_up(x, m):
    return ((x + m - 1) // m) * m


def _largest_divisor_tile(total, limit, quantum):
    """Largest multiple of `quantum` that divides `total`, capped at `limit`."""
    limit = max(quantum, min(limit, total))
    t = (limit // quantum) * quantum
    while t >= quantum:
        if total % t == 0:
            return t
        t -= quantum
    return None


def _vmem_budget_bytes():
    """~80% of this generation's physical per-core VMEM (v5e/v6e 128 MiB,
    v7x 64 MiB). Never claim the whole thing: Mosaic needs headroom for its
    internal scratch and pipeline bookkeeping."""
    try:
        cap = int(pltpu.get_tpu_info().vmem_capacity_bytes)
    except Exception:
        cap = 64 * 1024 * 1024        # conservative fallback = v7x per-TC VMEM
    return (cap * 4) // 5


def _bias_gelu_store(y_f32, b_row, o_ref):
    """Bias add + exact (erf) GELU epilogue, stored to o_ref.

    The matmul accumulation is always f32. For bf16 outputs the epilogue itself
    runs in bf16: the result is cast to bf16 anyway, and on v6e/v7x the bf16 VPU
    halves the VALU cycles of the erf polynomial (the saturating slot once the
    tiles are MXU-sized). f32 outputs keep an all-f32 epilogue (v5e has no bf16
    VPU and is MXU/HBM-bound there regardless).
    """
    y = y_f32 + b_row.astype(jnp.float32)
    if o_ref.dtype == jnp.bfloat16:
        y = y.astype(jnp.bfloat16)
    g = y * 0.5 * (1.0 + lax.erf(y * _INV_SQRT2))
    o_ref[...] = g.astype(o_ref.dtype)


def _ffn_kernel_resident(x_ref, w_ref, b_ref, o_ref, *, tn):
    # x_ref: (TM, H); w_ref: full (I_pad, H), VMEM-resident, torch [out, in]
    # layout; b_ref: (1, TN); o_ref: (TM, TN).
    j = pl.program_id(1)
    n0 = pl.multiple_of(j * tn, 128)
    w = w_ref[pl.ds(n0, tn), :]                            # (TN, H) slice of resident W
    y = lax.dot_general(
        x_ref[...], w, (((1,), (1,)), ((), ())),           # contract on H: x @ w^T
        preferred_element_type=jnp.float32)
    _bias_gelu_store(y, b_ref[...], o_ref)


def _ffn_kernel_tiled(x_ref, w_ref, b_ref, o_ref):
    # x_ref: (TM, H); w_ref: (TN, H) streamed tile; b_ref: (1, TN); o_ref: (TM, TN).
    y = lax.dot_general(
        x_ref[...], w_ref[...], (((1,), (1,)), ((), ())),  # x @ w^T
        preferred_element_type=jnp.float32)
    _bias_gelu_store(y, b_ref[...], o_ref)


def _plan_tn(i_pad, H, tm, budget, *, x_it, w_it, out_it, resident, w_buffers,
             tn_cap=None):
    """Largest 128-multiple divisor of i_pad whose per-step VMEM footprint fits."""
    fixed = _VMEM_RESERVE
    fixed += 2 * tm * H * x_it                  # double-buffered activation tile
    fixed += 2 * i_pad * 4                      # bias (tiny)
    if resident:
        fixed += w_buffers * i_pad * H * w_it   # whole weight, VMEM-resident
    per_col = 2 * tm * out_it                   # double-buffered output tile
    per_col += _F32_TMP_FACTOR * tm * 4         # f32 acc + GELU temporaries
    if not resident:
        per_col += 2 * H * w_it                 # double-buffered streamed W tile
    avail = budget - fixed
    if avail < per_col * 128:
        return None
    limit = min(i_pad, avail // per_col)
    if tn_cap is not None:
        limit = min(limit, tn_cap)
    return _largest_divisor_tile(i_pad, limit, 128)


def _choose_tiles(M, H, i_pad, budget, *, x_it, w_it, out_it, resident,
                  w_buffers, tm_pref, tn_cap):
    """Pick (tm, tn, needs_row_padding) fitting the VMEM budget, biggest first."""
    tm_caps = [c for c in (tm_pref, 256, 128, 64, 32, 16) if c <= tm_pref] or [16]
    seen = set()
    for tm_cap in tm_caps:
        tm_div = _largest_divisor_tile(M, tm_cap, 16)
        if tm_div is not None:
            tm_eff, pad_rows = tm_div, False
        else:
            # No 16-multiple divides M: pad the last row block instead.
            tm_eff, pad_rows = min(max(tm_cap, 16), _round_up(M, 16)), True
        if tm_eff in seen:
            continue
        seen.add(tm_eff)
        tn_eff = _plan_tn(i_pad, H, tm_eff, budget, x_it=x_it, w_it=w_it,
                          out_it=out_it, resident=resident,
                          w_buffers=w_buffers, tn_cap=tn_cap)
        if tn_eff is not None:
            return tm_eff, tn_eff, pad_rows
    return None


def bert_intermediate(hidden_states, weight, bias, *, tm=512, tn=None,
                      w_resident=None, vmem_limit_bytes=None):
    """BertIntermediate forward: exact-GELU(hidden_states @ weight.T + bias).

    hidden_states: [..., H]; weight: [I, H] (torch nn.Linear layout); bias: [I].
    """
    *lead, H = hidden_states.shape
    I, Hw = weight.shape
    assert Hw == H, "weight must be [intermediate, hidden]"
    assert bias.shape == (I,)

    M = 1
    for d in lead:
        M *= d
    dtype = hidden_states.dtype

    budget = int(vmem_limit_bytes) if vmem_limit_bytes is not None else _vmem_budget_bytes()

    i_pad = _round_up(I, 128)
    x_it = jnp.dtype(hidden_states.dtype).itemsize
    w_it = jnp.dtype(weight.dtype).itemsize
    out_it = x_it

    # ---- choose resident vs streaming + tile sizes against the VMEM budget ----
    resident = w_resident
    if resident is None:
        resident = i_pad * H * w_it <= (budget * 3) // 5   # single-copy resident W
    plan = None
    if resident:
        plan = _choose_tiles(M, H, i_pad, budget, x_it=x_it, w_it=w_it,
                             out_it=out_it, resident=True, w_buffers=1,
                             tm_pref=tm, tn_cap=tn)
    if plan is None:
        resident = False
        plan = _choose_tiles(M, H, i_pad, budget, x_it=x_it, w_it=w_it,
                             out_it=out_it, resident=False, w_buffers=2,
                             tm_pref=tm, tn_cap=tn)
    assert plan is not None, "could not fit any tile configuration in VMEM"
    tm_eff, tn_eff, pad_rows = plan

    num_j = i_pad // tn_eff
    num_i_total = _round_up(M, tm_eff) // tm_eff

    # v7x has 2 TensorCores sharing the "parallel" grid axes; keep >= 2 row blocks
    # when it is free (no extra padding) so a tiny grid does not idle one core.
    if resident and num_j == 1 and num_i_total == 1 and not pad_rows \
            and M >= 32 and (M // 2) % 16 == 0:
        tm_eff = M // 2

    m_pad = _round_up(M, tm_eff)

    x2d = hidden_states.reshape(M, H)
    if m_pad != M:
        # TODO(synk): a masked last row block would avoid this extra HBM round trip
        # for non-16-aligned token counts; BERT batches are normally aligned.
        x2d = jnp.pad(x2d, ((0, m_pad - M), (0, 0)))
    w = weight
    b = bias
    if i_pad != I:
        w = jnp.pad(w, ((0, i_pad - I), (0, 0)))
        b = jnp.pad(b, (0, i_pad - I))
    b2d = b.reshape(1, i_pad)

    num_i = m_pad // tm_eff

    if resident:
        kernel = functools.partial(_ffn_kernel_resident, tn=tn_eff)
        grid = (num_i, num_j)
        in_specs = [
            pl.BlockSpec((tm_eff, H), lambda i, j: (i, 0)),
            # Whole weight as a non-pipelined VMEM operand: copied once for the
            # entire grid, single-buffered (no pipeline duplication).
            pl.BlockSpec(memory_space=_MS.VMEM),
            pl.BlockSpec((1, tn_eff), lambda i, j: (0, j)),
        ]
        out_specs = pl.BlockSpec((tm_eff, tn_eff), lambda i, j: (i, j))
    else:
        kernel = _ffn_kernel_tiled
        x_bytes = m_pad * H * x_it
        w_bytes = i_pad * H * w_it
        # Loop order: re-stream whichever operand costs less total HBM traffic.
        feature_outer = x_bytes * num_j + w_bytes <= w_bytes * num_i + x_bytes
        if feature_outer:
            grid = (num_j, num_i)
            in_specs = [
                pl.BlockSpec((tm_eff, H), lambda j, i: (i, 0)),
                pl.BlockSpec((tn_eff, H), lambda j, i: (j, 0)),
                pl.BlockSpec((1, tn_eff), lambda j, i: (0, j)),
            ]
            out_specs = pl.BlockSpec((tm_eff, tn_eff), lambda j, i: (i, j))
        else:
            grid = (num_i, num_j)
            in_specs = [
                pl.BlockSpec((tm_eff, H), lambda i, j: (i, 0)),
                pl.BlockSpec((tn_eff, H), lambda i, j: (j, 0)),
                pl.BlockSpec((1, tn_eff), lambda i, j: (0, j)),
            ]
            out_specs = pl.BlockSpec((tm_eff, tn_eff), lambda i, j: (i, j))

    out = pl.pallas_call(
        kernel,
        out_shape=jax.ShapeDtypeStruct((m_pad, i_pad), dtype),
        grid_spec=pltpu.PrefetchScalarGridSpec(
            num_scalar_prefetch=0,
            grid=grid,
            in_specs=in_specs,
            out_specs=out_specs,
        ),
        compiler_params=pltpu.CompilerParams(
            dimension_semantics=("parallel", "parallel"),
            vmem_limit_bytes=budget,
        ),
    )(x2d, w, b2d)

    if m_pad != M or i_pad != I:
        out = out[:M, :I]
    return out.reshape(*lead, I)


if __name__ == "__main__":
    # Small config consistent with BertIntermediate: hidden_size=32, intermediate=128.
    B, S, H, I = 2, 8, 32, 128

    key = jax.random.PRNGKey(0)
    kx, kw, kb = jax.random.split(key, 3)

    hidden_states = jax.random.normal(kx, (B, S, H), dtype=jnp.float32)
    weight = jax.random.normal(kw, (I, H), dtype=jnp.float32) * (1.0 / math.sqrt(H))
    bias = jax.random.normal(kb, (I,), dtype=jnp.float32) * 0.01

    def reference(x, w, b):
        y = x.reshape(-1, x.shape[-1]).astype(jnp.float32) @ w.T.astype(jnp.float32)
        y = y + b.astype(jnp.float32)
        y = y * 0.5 * (1.0 + lax.erf(y * _INV_SQRT2))
        return y.reshape(x.shape[:-1] + (w.shape[0],))

    ref = reference(hidden_states, weight, bias)

    # 1) f32, VMEM-resident-weight path (collapsed feature axis).
    out = jax.block_until_ready(bert_intermediate(hidden_states, weight, bias))
    assert out.shape == (B, S, I)
    assert jnp.allclose(out, ref, atol=2e-5, rtol=2e-5), "f32 resident path mismatch"

    # 2) f32, streaming-weight fallback path.
    out_t = jax.block_until_ready(
        bert_intermediate(hidden_states, weight, bias, w_resident=False))
    assert jnp.allclose(out_t, ref, atol=2e-5, rtol=2e-5), "f32 streaming path mismatch"

    # 3) bf16 inputs/weights: f32 MXU accumulation + bf16 epilogue.
    hs_bf16 = hidden_states.astype(jnp.bfloat16)
    w_bf16 = weight.astype(jnp.bfloat16)
    b_bf16 = bias.astype(jnp.bfloat16)
    out_bf16 = jax.block_until_ready(bert_intermediate(hs_bf16, w_bf16, b_bf16))
    ref_bf16 = reference(hs_bf16, w_bf16, b_bf16)
    assert out_bf16.dtype == jnp.bfloat16
    assert jnp.allclose(out_bf16.astype(jnp.float32), ref_bf16, atol=5e-2, rtol=5e-2), \
        "bf16 path mismatch"

    # 4) Multi-block grid (several row blocks, tm forced small) — resident path.
    hs2 = jax.random.normal(kx, (2, 128, 128), dtype=jnp.float32)
    w2 = jax.random.normal(kw, (512, 128), dtype=jnp.float32) * (1.0 / math.sqrt(128))
    b2 = jax.random.normal(kb, (512,), dtype=jnp.float32) * 0.01
    out2 = jax.block_until_ready(bert_intermediate(hs2, w2, b2, tm=64))
    assert jnp.allclose(out2, reference(hs2, w2, b2), atol=1e-4, rtol=1e-4), \
        "multi-block path mismatch"

    # 5) Non-16-aligned token count (padded last row block).
    hs3 = hs2[:1, :10]
    out3 = jax.block_until_ready(bert_intermediate(hs3, w2, b2))
    assert jnp.allclose(out3, reference(hs3, w2, b2), atol=1e-4, rtol=1e-4), \
        "padded-row path mismatch"

    print("KERNEL_OK")
</pallas_src>

<mosaic_0001>
module attributes {stable_mosaic.version = 11 : i64} {
  func.func @_ffn_kernel_resident(%arg0: i32, %arg1: i32, %arg2: memref<16x32xf32, #tpu.memory_space<vmem>>, %arg3: memref<128x32xf32, #tpu.memory_space<vmem>>, %arg4: memref<1x128xf32, #tpu.memory_space<vmem>>, %arg5: memref<16x128xf32, #tpu.memory_space<vmem>>) attributes {dimension_semantics = [#tpu.dimension_semantics<parallel>, #tpu.dimension_semantics<parallel>], iteration_bounds = array<i64: 1, 1>, scalar_prefetch = 0 : i64, scratch_operands = 0 : i64, tpu.core_type = #tpu.core_type<tc>, window_params = [{transform_indices = @transform_0, window_bounds = array<i64: 16, 32>}, {pipeline_mode = #tpu.pipeline_mode<synchronous>, transform_indices = @transform_1, window_bounds = array<i64: 128, 32>}, {transform_indices = @transform_2, window_bounds = array<i64: 1, 128>}, {transform_indices = @transform_3, window_bounds = array<i64: 16, 128>}]} {
    %c128_i32 = arith.constant 128 : i32
    %0 = arith.muli %arg1, %c128_i32 : i32
    %1 = tpu.assume_multiple %0, 128 : i32
    %2 = arith.index_cast %1 : i32 to index
    %c0 = arith.constant 0 : index
    %3 = vector.load %arg3[%2, %c0] : memref<128x32xf32, #tpu.memory_space<vmem>>, vector<128x32xf32>
    %c0_0 = arith.constant 0 : index
    %c0_1 = arith.constant 0 : index
    %4 = vector.load %arg2[%c0_0, %c0_1] : memref<16x32xf32, #tpu.memory_space<vmem>>, vector<16x32xf32>
    %cst = arith.constant dense<0.000000e+00> : vector<16x128xf32>
    %5 = tpu.matmul %4, %3, %cst {dimension_numbers = #tpu.dot_dimension_numbers<[1], [1], [0], [0], [0, 0, 1, 0], [], []>} : vector<16x32xf32>, vector<128x32xf32>, vector<16x128xf32> -> vector<16x128xf32>
    %c0_2 = arith.constant 0 : index
    %c0_3 = arith.constant 0 : index
    %6 = vector.load %arg4[%c0_2, %c0_3] : memref<1x128xf32, #tpu.memory_space<vmem>>, vector<1x128xf32>
    %7 = vector.broadcast %6 : vector<1x128xf32> to vector<16x128xf32>
    %8 = arith.addf %5, %7 : vector<16x128xf32>
    %cst_4 = arith.constant 5.000000e-01 : f32
    %9 = vector.broadcast %cst_4 : f32 to vector<16x128xf32>
    %10 = arith.mulf %8, %9 : vector<16x128xf32>
    %cst_5 = arith.constant 0.707106769 : f32
    %11 = vector.broadcast %cst_5 : f32 to vector<16x128xf32>
    %12 = arith.mulf %8, %11 : vector<16x128xf32>
    %13 = math.erf %12 : vector<16x128xf32>
    %cst_6 = arith.constant 1.000000e+00 : f32
    %14 = vector.broadcast %cst_6 : f32 to vector<16x128xf32>
    %15 = arith.addf %14, %13 : vector<16x128xf32>
    %16 = arith.mulf %10, %15 : vector<16x128xf32>
    %c0_7 = arith.constant 0 : index
    %c0_8 = arith.constant 0 : index
    %17 = vector.load %arg5[%c0_7, %c0_8] : memref<16x128xf32, #tpu.memory_space<vmem>>, vector<16x128xf32>
    tpu.vector_store %arg5[%c0_7, %c0_8], %16 {strides = array<i32>} : memref<16x128xf32, #tpu.memory_space<vmem>>, vector<16x128xf32>,
    return
  }
  func.func @transform_0(%arg0: i32, %arg1: i32) -> (i32, i32) {
    %c0_i32 = arith.constant 0 : i32
    %c0_i32_0 = arith.constant 0 : i32
    return %arg0, %c0_i32 : i32, i32
  }
  func.func @transform_1(%arg0: i32, %arg1: i32) -> (i32, i32) {
    %c0_i32 = arith.constant 0 : i32
    %c0_i32_0 = arith.constant 0 : i32
    %c0_i32_1 = arith.constant 0 : i32
    return %c0_i32, %c0_i32_0 : i32, i32
  }
  func.func @transform_2(%arg0: i32, %arg1: i32) -> (i32, i32) {
    %c0_i32 = arith.constant 0 : i32
    %c0_i32_0 = arith.constant 0 : i32
    return %c0_i32, %arg1 : i32, i32
  }
  func.func @transform_3(%arg0: i32, %arg1: i32) -> (i32, i32) {
    %c0_i32 = arith.constant 0 : i32
    return %arg0, %arg1 : i32, i32
  }
}

</mosaic_0001>

<llo_original>
// kernel: tpu_custom_call.1
$region0: #{tpu_custom_call.1}
  #allocation0 [shape = 'u32[]', space=smem, size = 0x4, offset = 0x4, fixed_abs, tag = 'smem constant byte address 0x4 - core index']
  #allocation1 [shape = 'u32[144,128]{1,0:T(1,128)}', space=vmem, size = 0x12000, scoped, tag = 'internal scratch']
  %s0 = inlined_call_operand.vmem [shape: f32[16,32], index: 0, kind: input, shape index: {}]
  %s1 = inlined_call_operand.vmem [shape: f32[128,32], index: 1, kind: input, shape index: {}]
  %s2 = inlined_call_operand.vmem [shape: f32[1,128], index: 2, kind: input, shape index: {}]
  %s3 = inlined_call_operand.hbm [shape: f32[16,128], index: 3, kind: output, shape index: {}]
  %s4 = sld [smem:[#allocation0]]
  $region22: #{tpu_custom_call.1} parent=0
    _
  %s6 = ssub.s32 1, %s4
  %s7 = scalar_select 0, %s6, %s4
  $region1: #{tpu_custom_call.1} parent=0
    #allocation2 [shape = 'u8[8192]{0}', space=vmem, size = 0x2000, scoped, tag = 'output window, operand 0, single buffered']
    #allocation3 [shape = 's32[1]{0}', space=sflag, size = 0x4, scoped, tag = 'scoped memory for tpu_custom_call.1']
    %8 = vsyncpa [#allocation3], 0
    // Predicated region
    $region2: #{tpu_custom_call.1} parent=1 // pred_check
      _
    $region3: #{tpu_custom_call.1} parent=1 // pred_check_branch
      %10 = sbr.rel (0) target = $region5
    $region4: #{tpu_custom_call.1} parent=1 // pred_region
      _
    $region5: #{tpu_custom_call.1} parent=1 // pred_fallthru
      _
    // Predicated region
    $region6: #{tpu_custom_call.1} parent=1 // pred_check
      _
    $region7: #{tpu_custom_call.1} parent=1 // pred_check_branch
      %12 = sbr.rel (0) target = $region9
    $region8: #{tpu_custom_call.1} parent=1 // pred_region
      _
    $region9: #{tpu_custom_call.1} parent=1 // pred_fallthru
      _
    // Predicated region
    $region10: #{tpu_custom_call.1} parent=1 // pred_check
      _
    $region11: #{tpu_custom_call.1} parent=1 // pred_check_branch
      %14 = sbr.rel (0) target = $region13
    $region12: #{tpu_custom_call.1} parent=1 // pred_region
      _
    $region13: #{tpu_custom_call.1} parent=1 // pred_fallthru
      _
    %s15 = smul.u32 0, 128
    %s16 = scalar_lea.vmem %s1, %s15
    %v17 = vld [vmem:[%s16] sm:$0xff]
    %v18 = vld [vmem:[%s16 + $0x8] sm:$0xff]
    %v19 = vld [vmem:[%s16 + $0x10] sm:$0xff]
    %v20 = vld [vmem:[%s16 + $0x18] sm:$0xff]
    %v21 = vld [vmem:[%s16 + $0x20] sm:$0xff]
    %v22 = vld [vmem:[%s16 + $0x28] sm:$0xff]
    %v23 = vld [vmem:[%s16 + $0x30] sm:$0xff]
    %v24 = vld [vmem:[%s16 + $0x38] sm:$0xff]
    %v25 = vld [vmem:[%s16 + $0x40] sm:$0xff]
    %v26 = vld [vmem:[%s16 + $0x48] sm:$0xff]
    %v27 = vld [vmem:[%s16 + $0x50] sm:$0xff]
    %v28 = vld [vmem:[%s16 + $0x58] sm:$0xff]
    %v29 = vld [vmem:[%s16 + $0x60] sm:$0xff]
    %v30 = vld [vmem:[%s16 + $0x68] sm:$0xff]
    %v31 = vld [vmem:[%s16 + $0x70] sm:$0xff]
    %v32 = vld [vmem:[%s16 + $0x78] sm:$0xff]
    %v33 = vld [vmem:[%s0] sm:$0xff]
    %v34 = vld [vmem:[%s0 + $0x8] sm:$0xff]
    %v35 = vld [vmem:[%s2] sm:$0x1]
    %v37 = vlaneseq
    %v38 = vshrl.u32 %v37, 7
    %v39 = vsub.s32 0, %v38
    %v40 = vrot.slane %v35, %v39
    %vm42 = vcmask 261120
    %v44 = vsel %vm42, %v33, 0
    %v47 = vsel %vm42, %v34, 0
    %v50 = vsel %vm42, %v17, 0
    %v53 = vsel %vm42, %v18, 0
    %v56 = vsel %vm42, %v19, 0
    %v59 = vsel %vm42, %v20, 0
    %v62 = vsel %vm42, %v21, 0
    %v65 = vsel %vm42, %v22, 0
    %v68 = vsel %vm42, %v23, 0
    %v71 = vsel %vm42, %v24, 0
    %v74 = vsel %vm42, %v25, 0
    %v77 = vsel %vm42, %v26, 0
    %v80 = vsel %vm42, %v27, 0
    %v83 = vsel %vm42, %v28, 0
    %v86 = vsel %vm42, %v29, 0
    %v89 = vsel %vm42, %v30, 0
    %v92 = vsel %vm42, %v31, 0
    %v95 = vsel %vm42, %v32, 0
    %97 = vmatprep.subr.mxu0 0.0
    %98 = vmatpush1.xpose.msra.mxu0 %v50
    %99 = vmatprep.subr.mxu0 0.0
    %100 = vmatpush1.xpose.msra.mxu0 %v53
    %101 = vmatprep.subr.mxu0 0.0
    %102 = vmatpush1.xpose.msra.mxu0 %v56
    %103 = vmatprep.subr.mxu0 0.0
    %104 = vmatpush1.xpose.msra.mxu0 %v59
    %105 = vmatprep.subr.mxu0 0.0
    %106 = vmatpush1.xpose.msra.mxu0 %v62
    %107 = vmatprep.subr.mxu0 0.0
    %108 = vmatpush1.xpose.msra.mxu0 %v65
    %109 = vmatprep.subr.mxu0 0.0
    %110 = vmatpush1.xpose.msra.mxu0 %v68
    %111 = vmatprep.subr.mxu0 0.0
    %112 = vmatpush1.xpose.msra.mxu0 %v71
    %113 = vmatprep.subr.mxu0 0.0
    %114 = vmatpush1.xpose.msra.mxu0 %v74
    %115 = vmatprep.subr.mxu0 0.0
    %116 = vmatpush1.xpose.msra.mxu0 %v77
    %117 = vmatprep.subr.mxu0 0.0
    %118 = vmatpush1.xpose.msra.mxu0 %v80
    %119 = vmatprep.subr.mxu0 0.0
    %120 = vmatpush1.xpose.msra.mxu0 %v83
    %121 = vmatprep.subr.mxu0 0.0
    %122 = vmatpush1.xpose.msra.mxu0 %v86
    %123 = vmatprep.subr.mxu0 0.0
    %124 = vmatpush1.xpose.msra.mxu0 %v89
    %125 = vmatprep.subr.mxu0 0.0
    %126 = vmatpush1.xpose.msra.mxu0 %v92
    %127 = vmatprep.subr.mxu0 0.0
    %128 = vmatpush1.xpose.msra.mxu0 %v95
    %129 = vmatprep.subr.mxu0 0.0
    %130 = vmatpush1.xpose.msra.mxu0 0.0
    %131 = vmatprep.subr.mxu0 0.0
    %132 = vmatpush1.xpose.msra.mxu0 0.0
    %133 = vmatprep.subr.mxu0 0.0
    %134 = vmatpush1.xpose.msra.mxu0 0.0
    %135 = vmatprep.subr.mxu0 0.0
    %136 = vmatpush1.xpose.msra.mxu0 0.0
    %137 = vmatprep.subr.mxu0 0.0
    %138 = vmatpush1.xpose.msra.mxu0 0.0
    %139 = vmatprep.subr.mxu0 0.0
    %140 = vmatpush1.xpose.msra.mxu0 0.0
    %141 = vmatprep.subr.mxu0 0.0
    %142 = vmatpush1.xpose.msra.mxu0 0.0
    %143 = vmatprep.subr.mxu0 0.0
    %144 = vmatpush1.xpose.msra.mxu0 0.0
    %145 = vmatprep.subr.mxu0 0.0
    %146 = vmatpush1.xpose.msra.mxu0 0.0
    %147 = vmatprep.subr.mxu0 0.0
    %148 = vmatpush1.xpose.msra.mxu0 0.0
    %149 = vmatprep.subr.mxu0 0.0
    %150 = vmatpush1.xpose.msra.mxu0 0.0
    %151 = vmatprep.subr.mxu0 0.0
    %152 = vmatpush1.xpose.msra.mxu0 0.0
    %153 = vmatprep.subr.mxu0 0.0
    %154 = vmatpush1.xpose.msra.mxu0 0.0
    %155 = vmatprep.subr.mxu0 0.0
    %156 = vmatpush1.xpose.msra.mxu0 0.0
    %157 = vmatprep.subr.mxu0 0.0
    %158 = vmatpush1.xpose.msra.mxu0 0.0
    %159 = vmatprep.subr.mxu0 0.0
    %160 = vmatpush1.xpose.msra.mxu0 0.0
    %161 = vmatprep.mubr.f32.mxu0 0.0
    %162 = vmatmul.mubr.f32.gmra.mrb[0].mxu0 %v44
    %v163 = vpop.f32.mrb[0].mxu0
    %v164 = vadd.f32 %v40, %v163
    %v165 = vpop.f32.mrb[0].mxu0
    %166 = vmatprep.mubr.f32.mxu0 0.0
    %167 = vmatmul.mubr.f32.gmra.mrb[0].mxu0 %v47
    %v168 = vpop.f32.mrb[0].mxu0
    %v169 = vadd.f32 %v40, %v168
    %v170 = vpop.f32.mrb[0].mxu0
    %171 = vdwg.mxu0
    %v172 = vmul.f32 %v164, 0.5
    %v173 = vmul.f32 %v169, 0.5
    %v174 = vmul.f32 %v164, 0.70710677
    %v175 = vmul.f32 %v169, 0.70710677
    %v176 = verf.f32.pop %v174
    %v177 = verf.f32.pop %v175
    %v178 = vadd.f32 %v176, 1.0
    %v179 = vadd.f32 %v177, 1.0
    %v180 = vmul.f32 %v172, %v178
    %v181 = vmul.f32 %v173, %v179
    %182 = vst [vmem:[#allocation2] sm:$0xff] %v180
    %183 = vst [vmem:[#allocation2 + $0x8] sm:$0xff] %v181
    // Predicated region
    $region14: #{tpu_custom_call.1} parent=1 // pred_check
      _
    $region15: #{tpu_custom_call.1} parent=1 // pred_check_branch
      %185 = sbr.rel (0) target = $region17
    $region16: #{tpu_custom_call.1} parent=1 // pred_region
      %s187 = ssub.s32 256, 256
      %188 = vsyncadd [#allocation3], %s187
      %s189 = sshll.u32 [#allocation2], 4
      %s190 = int_to_ptr.vmem [resolvable:$true] %s189
      %195 = dma.vmem_to_hbm [thread:$0]  %s190, 256, %s3, [#allocation3], 128, 128, 8
    $region17: #{tpu_custom_call.1} parent=1 // pred_fallthru
      _
    // Predicated region
    $region18: #{tpu_custom_call.1} parent=1 // pred_check
      _
    $region19: #{tpu_custom_call.1} parent=1 // pred_check_branch
      %197 = sbr.rel (0) target = $region21
    $region20: #{tpu_custom_call.1} parent=1 // pred_region
      %198 = dma.done [#allocation3], 256
    $region21: #{tpu_custom_call.1} parent=1 // pred_fallthru
      _
    %199 = vsyncpa [#allocation3], 1

</llo_original>
